<compile_context>
chip_gen: v5e
topology: v5e:2x2
jax: 0.10.0
libtpu: 0.0.40
codegen_flags: <defaults>
</compile_context>

<pallas_src>
import jax
import jax.numpy as jnp
from jax.experimental import pallas as pl
from jax.experimental.pallas import tpu as pltpu


def lstm_fc_kernel(x_ref, w_ih_ref, w_hh_ref, b_ref, w_fc_ref, b_fc_ref, out_ref):
    """Full recurrence + final FC + sigmoid for one batch block.

    x_ref    : (S*Bb, I) f32   time-major input rows (row t*Bb + j = seq j, step t)
    w_ih_ref : (I, 4H)   bf16  input->gates weight (transposed)
    w_hh_ref : (H, 4H)   bf16  hidden->gates weight (transposed)
    b_ref    : (1, 4H)   f32   b_ih + b_hh combined
    w_fc_ref : (H, O)    bf16  final linear weight (transposed)
    b_fc_ref : (1, O)    f32   final linear bias
    out_ref  : (Bb, O)   f32   sigmoid(fc(h_last)) per sequence in the block
    """
    Bb = out_ref.shape[0]
    seq_len = x_ref.shape[0] // Bb
    H = w_hh_ref.shape[0]

    # Hoisted input projection: one (S*Bb, I) @ (I, 4H) MXU matmul + bias,
    # completely off the serial h->h chain.
    x_bf = x_ref[...].astype(jnp.bfloat16)
    xproj = (
        jnp.dot(x_bf, w_ih_ref[...], preferred_element_type=jnp.float32)
        + b_ref[...]
    )  # (S*Bb, 4H) f32

    # Pre-split per-step slabs before the recurrence (each is one vreg for
    # Bb=8, 4H=128) so no extraction happens on the critical path.
    xs = [xproj[t * Bb:(t + 1) * Bb, :] for t in range(seq_len)]

    w_hh = w_hh_ref[...]  # (H, 4H) bf16, live across the unrolled loop

    h = jnp.zeros((Bb, H), jnp.float32)
    c = jnp.zeros((Bb, H), jnp.float32)

    # Fully unrolled recurrence (static trip count, static slices).
    for t in range(seq_len):
        gates = xs[t] + jnp.dot(
            h.astype(jnp.bfloat16), w_hh, preferred_element_type=jnp.float32
        )  # (Bb, 4H) f32

        # One EUP launch for both activations: sigma(x) = 0.5*(1 + tanh(x/2)).
        # tanh is applied to all four gate blocks on purpose (safe, saturating).
        stacked = jnp.concatenate([0.5 * gates, gates], axis=0)  # (2*Bb, 4H)
        tt = jnp.tanh(stacked)
        sig = 0.5 + 0.5 * tt[:Bb, :]   # sigmoid(gates)
        th = tt[Bb:, :]                # tanh(gates)

        i_g = sig[:, 0 * H:1 * H]
        f_g = sig[:, 1 * H:2 * H]
        g_g = th[:, 2 * H:3 * H]
        o_g = sig[:, 3 * H:4 * H]

        c = f_g * c + i_g * g_g
        h = o_g * jnp.tanh(c)          # second (and last) EUP launch of the step

    logits = (
        jnp.dot(h.astype(jnp.bfloat16), w_fc_ref[...],
                preferred_element_type=jnp.float32)
        + b_fc_ref[...]
    )
    out_ref[...] = jax.nn.sigmoid(logits)


def lstm_model_forward(x_batch, params, *, batch_block=8):
    """Batched forward: x_batch (B, S, I) f32 -> (B, O) f32.

    Row b of the output equals LSTMModel.forward(x_batch[b]) of the PyTorch
    module (batch dim of the nn.LSTM is 1 and folded out, as in the spec).
    """
    w_ih_t, w_hh_t, b, w_fc_t, b_fc = params
    B, S, I = x_batch.shape
    H = w_hh_t.shape[0]
    O = w_fc_t.shape[1]
    Bb = batch_block

    # Pad batch to a multiple of the block, then lay out as
    # (n_blk, S*Bb, I) with rows time-major inside each block.
    B_pad = ((B + Bb - 1) // Bb) * Bb
    if B_pad != B:
        x_batch = jnp.pad(x_batch, ((0, B_pad - B), (0, 0), (0, 0)))
    n_blk = B_pad // Bb
    x_blocks = (
        x_batch.reshape(n_blk, Bb, S, I)
        .transpose(0, 2, 1, 3)           # (n_blk, S, Bb, I)
        .reshape(n_blk, S * Bb, I)
    )

    flops = B_pad * (2 * S * I * 4 * H + S * 2 * H * 4 * H + 2 * H * O)
    transcendentals = B_pad * (S * (2 * 4 * H + H) + O)
    bytes_accessed = (
        x_blocks.size * 4
        + (w_ih_t.size + w_hh_t.size + w_fc_t.size) * 2
        + (b.size + b_fc.size) * 4
        + B_pad * O * 4
    )

    out = pl.pallas_call(
        lstm_fc_kernel,
        out_shape=jax.ShapeDtypeStruct((B_pad, O), jnp.float32),
        grid=(n_blk,),
        in_specs=[
            pl.BlockSpec((None, S * Bb, I), lambda i: (i, 0, 0)),  # per-block x
            pl.BlockSpec((I, 4 * H), lambda i: (0, 0)),            # weights: same
            pl.BlockSpec((H, 4 * H), lambda i: (0, 0)),            # block every
            pl.BlockSpec((1, 4 * H), lambda i: (0, 0)),            # grid step ->
            pl.BlockSpec((H, O), lambda i: (0, 0)),                # no re-DMA
            pl.BlockSpec((1, O), lambda i: (0, 0)),
        ],
        out_specs=pl.BlockSpec((Bb, O), lambda i: (i, 0)),
        compiler_params=pltpu.CompilerParams(
            dimension_semantics=("parallel",)),   # both TCs on v7x
        cost_estimate=pl.CostEstimate(
            flops=flops,
            transcendentals=transcendentals,
            bytes_accessed=bytes_accessed),
    )(x_blocks, w_ih_t, w_hh_t, b, w_fc_t, b_fc)
    return out[:B]


def lstm_model_forward_single(x_seq, params, *, batch_block=8):
    """Exact PyTorch LSTMModel.forward: x_seq (S, I) f32 -> (1, O) f32."""
    return lstm_model_forward(x_seq[None, :, :], params,
                              batch_block=batch_block)[:1]


def make_params(key, input_size, hidden_size, output_size):
    """Deterministic synthetic parameters (PyTorch-style uniform init)."""
    k = jax.random.split(key, 6)
    bound = 1.0 / jnp.sqrt(hidden_size)

    w_ih = jax.random.uniform(k[0], (4 * hidden_size, input_size),
                              jnp.float32, -bound, bound)
    w_hh = jax.random.uniform(k[1], (4 * hidden_size, hidden_size),
                              jnp.float32, -bound, bound)
    b_ih = jax.random.uniform(k[2], (4 * hidden_size,), jnp.float32, -bound, bound)
    b_hh = jax.random.uniform(k[3], (4 * hidden_size,), jnp.float32, -bound, bound)
    w_fc = jax.random.uniform(k[4], (output_size, hidden_size),
                              jnp.float32, -bound, bound)
    b_fc = jax.random.uniform(k[5], (output_size,), jnp.float32, -bound, bound)

    # Kernel-friendly forms: transposed, MXU operands stored bf16,
    # biases / accumulators kept f32 (v5e has no bf16 VPU/EUP path).
    w_ih_t = w_ih.T.astype(jnp.bfloat16)             # (I, 4H)
    w_hh_t = w_hh.T.astype(jnp.bfloat16)             # (H, 4H)
    b = (b_ih + b_hh).reshape(1, 4 * hidden_size)    # (1, 4H) f32
    w_fc_t = w_fc.T.astype(jnp.bfloat16)             # (H, O)
    b_fc2 = b_fc.reshape(1, output_size)             # (1, O) f32
    return (w_ih_t, w_hh_t, b, w_fc_t, b_fc2)


def reference_forward_single(x_seq, params):
    """Pure-JAX reference mirroring PyTorch nn.LSTM + Linear + Sigmoid.

    Mirrors the kernel's MXU precision (bf16 operands, f32 accumulation) so
    the comparison tolerance stays tight; a true f32 PyTorch module would
    deviate slightly more due to the bf16-stored weights.
    """
    w_ih_t, w_hh_t, b, w_fc_t, b_fc = params
    H = w_hh_t.shape[0]
    xproj = jnp.dot(x_seq.astype(jnp.bfloat16), w_ih_t,
                    preferred_element_type=jnp.float32) + b
    h = jnp.zeros((1, H), jnp.float32)
    c = jnp.zeros((1, H), jnp.float32)
    for t in range(x_seq.shape[0]):
        gates = xproj[t:t + 1] + jnp.dot(
            h.astype(jnp.bfloat16), w_hh_t, preferred_element_type=jnp.float32)
        i_g = jax.nn.sigmoid(gates[:, 0 * H:1 * H])
        f_g = jax.nn.sigmoid(gates[:, 1 * H:2 * H])
        g_g = jnp.tanh(gates[:, 2 * H:3 * H])
        o_g = jax.nn.sigmoid(gates[:, 3 * H:4 * H])
        c = f_g * c + i_g * g_g
        h = o_g * jnp.tanh(c)
    logits = jnp.dot(h.astype(jnp.bfloat16), w_fc_t,
                     preferred_element_type=jnp.float32) + b_fc
    return jax.nn.sigmoid(logits)


if __name__ == "__main__":
    SEQ, INPUT, HIDDEN, OUTPUT = 8, 16, 32, 8
    BATCH = 16   # batch of independent sequences (2 grid blocks of 8)

    key = jax.random.PRNGKey(0)
    kx, kp = jax.random.split(key)
    x = jax.random.normal(kx, (BATCH, SEQ, INPUT), jnp.float32)
    params = make_params(kp, INPUT, HIDDEN, OUTPUT)

    fwd = jax.jit(lambda xb: lstm_model_forward(xb, params))
    out = jax.block_until_ready(fwd(x))
    assert out.shape == (BATCH, OUTPUT)

    ref = jnp.concatenate(
        [reference_forward_single(x[i], params) for i in range(BATCH)], axis=0)
    assert jnp.allclose(out, ref, atol=5e-3, rtol=5e-3), (out, ref)

    # Module-equivalent single-sequence path (matches LSTMModel.forward shape).
    out1 = jax.block_until_ready(lstm_model_forward_single(x[0], params))
    assert out1.shape == (1, OUTPUT)
    assert jnp.allclose(out1, out[0:1], atol=5e-3, rtol=5e-3), (out1, out[0:1])

    print("KERNEL_OK")
</pallas_src>

<mosaic_0001>
module attributes {stable_mosaic.version = 11 : i64} {
  func.func @lstm_fc_kernel(%arg0: i32, %arg1: memref<1x64x16xf32, #tpu.memory_space<vmem>>, %arg2: memref<16x128xbf16, #tpu.memory_space<vmem>>, %arg3: memref<32x128xbf16, #tpu.memory_space<vmem>>, %arg4: memref<1x128xf32, #tpu.memory_space<vmem>>, %arg5: memref<32x8xbf16, #tpu.memory_space<vmem>>, %arg6: memref<1x8xf32, #tpu.memory_space<vmem>>, %arg7: memref<8x8xf32, #tpu.memory_space<vmem>>) attributes {dimension_semantics = [#tpu.dimension_semantics<parallel>], iteration_bounds = array<i64: 2>, scalar_prefetch = 0 : i64, scratch_operands = 0 : i64, tpu.core_type = #tpu.core_type<tc>, window_params = [{transform_indices = @transform_0, window_bounds = array<i64: 1, 64, 16>}, {pipeline_mode = #tpu.pipeline_mode<synchronous>, transform_indices = @transform_1, window_bounds = array<i64: 16, 128>}, {pipeline_mode = #tpu.pipeline_mode<synchronous>, transform_indices = @transform_2, window_bounds = array<i64: 32, 128>}, {pipeline_mode = #tpu.pipeline_mode<synchronous>, transform_indices = @transform_3, window_bounds = array<i64: 1, 128>}, {pipeline_mode = #tpu.pipeline_mode<synchronous>, transform_indices = @transform_4, window_bounds = array<i64: 32, 8>}, {pipeline_mode = #tpu.pipeline_mode<synchronous>, transform_indices = @transform_5, window_bounds = array<i64: 1, 8>}, {transform_indices = @transform_6, window_bounds = array<i64: 8, 8>}]} {
    %c0 = arith.constant 0 : index
    %c0_0 = arith.constant 0 : index
    %c0_1 = arith.constant 0 : index
    %0 = vector.load %arg1[%c0, %c0_0, %c0_1] : memref<1x64x16xf32, #tpu.memory_space<vmem>>, vector<1x64x16xf32>
    %1 = vector.shape_cast %0 : vector<1x64x16xf32> to vector<64x16xf32>
    %2 = arith.truncf %1 : vector<64x16xf32> to vector<64x16xbf16>
    %c0_2 = arith.constant 0 : index
    %c0_3 = arith.constant 0 : index
    %3 = vector.load %arg2[%c0_2, %c0_3] : memref<16x128xbf16, #tpu.memory_space<vmem>>, vector<16x128xbf16>
    %cst = arith.constant dense<0.000000e+00> : vector<64x128xf32>
    %4 = tpu.matmul %2, %3, %cst {dimension_numbers = #tpu.dot_dimension_numbers<[1], [0], [0], [1], [0, 0, 1, 1], [], []>} : vector<64x16xbf16>, vector<16x128xbf16>, vector<64x128xf32> -> vector<64x128xf32>
    %c0_4 = arith.constant 0 : index
    %c0_5 = arith.constant 0 : index
    %5 = vector.load %arg4[%c0_4, %c0_5] : memref<1x128xf32, #tpu.memory_space<vmem>>, vector<1x128xf32>
    %6 = vector.broadcast %5 : vector<1x128xf32> to vector<64x128xf32>
    %7 = arith.addf %4, %6 : vector<64x128xf32>
    %8 = vector.extract_strided_slice %7 {offsets = [0, 0], sizes = [8, 128], strides = [1, 1]} : vector<64x128xf32> to vector<8x128xf32>
    %9 = vector.extract_strided_slice %7 {offsets = [8, 0], sizes = [8, 128], strides = [1, 1]} : vector<64x128xf32> to vector<8x128xf32>
    %10 = vector.extract_strided_slice %7 {offsets = [16, 0], sizes = [8, 128], strides = [1, 1]} : vector<64x128xf32> to vector<8x128xf32>
    %11 = vector.extract_strided_slice %7 {offsets = [24, 0], sizes = [8, 128], strides = [1, 1]} : vector<64x128xf32> to vector<8x128xf32>
    %12 = vector.extract_strided_slice %7 {offsets = [32, 0], sizes = [8, 128], strides = [1, 1]} : vector<64x128xf32> to vector<8x128xf32>
    %13 = vector.extract_strided_slice %7 {offsets = [40, 0], sizes = [8, 128], strides = [1, 1]} : vector<64x128xf32> to vector<8x128xf32>
    %14 = vector.extract_strided_slice %7 {offsets = [48, 0], sizes = [8, 128], strides = [1, 1]} : vector<64x128xf32> to vector<8x128xf32>
    %15 = vector.extract_strided_slice %7 {offsets = [56, 0], sizes = [8, 128], strides = [1, 1]} : vector<64x128xf32> to vector<8x128xf32>
    %c0_6 = arith.constant 0 : index
    %c0_7 = arith.constant 0 : index
    %16 = vector.load %arg3[%c0_6, %c0_7] : memref<32x128xbf16, #tpu.memory_space<vmem>>, vector<32x128xbf16>
    %cst_8 = arith.constant 0.000000e+00 : f32
    %17 = vector.broadcast %cst_8 : f32 to vector<8x32xf32>
    %cst_9 = arith.constant 0.000000e+00 : f32
    %18 = vector.broadcast %cst_9 : f32 to vector<8x32xf32>
    %19 = arith.truncf %17 : vector<8x32xf32> to vector<8x32xbf16>
    %cst_10 = arith.constant dense<0.000000e+00> : vector<8x128xf32>
    %20 = tpu.matmul %19, %16, %cst_10 {dimension_numbers = #tpu.dot_dimension_numbers<[1], [0], [0], [1], [0, 0, 1, 1], [], []>} : vector<8x32xbf16>, vector<32x128xbf16>, vector<8x128xf32> -> vector<8x128xf32>
    %21 = arith.addf %8, %20 : vector<8x128xf32>
    %cst_11 = arith.constant 5.000000e-01 : f32
    %22 = vector.broadcast %cst_11 : f32 to vector<8x128xf32>
    %23 = arith.mulf %22, %21 : vector<8x128xf32>
    %24 = tpu.concatenate %23, %21 in 0 : vector<8x128xf32>, vector<8x128xf32> -> vector<16x128xf32>
    %25 = math.tanh %24 : vector<16x128xf32>
    %26 = vector.extract_strided_slice %25 {offsets = [0, 0], sizes = [8, 128], strides = [1, 1]} : vector<16x128xf32> to vector<8x128xf32>
    %cst_12 = arith.constant 5.000000e-01 : f32
    %27 = vector.broadcast %cst_12 : f32 to vector<8x128xf32>
    %28 = arith.mulf %27, %26 : vector<8x128xf32>
    %cst_13 = arith.constant 5.000000e-01 : f32
    %29 = vector.broadcast %cst_13 : f32 to vector<8x128xf32>
    %30 = arith.addf %29, %28 : vector<8x128xf32>
    %31 = vector.extract_strided_slice %25 {offsets = [8, 0], sizes = [8, 128], strides = [1, 1]} : vector<16x128xf32> to vector<8x128xf32>
    %32 = vector.extract_strided_slice %30 {offsets = [0, 0], sizes = [8, 32], strides = [1, 1]} : vector<8x128xf32> to vector<8x32xf32>
    %33 = vector.extract_strided_slice %30 {offsets = [0, 32], sizes = [8, 32], strides = [1, 1]} : vector<8x128xf32> to vector<8x32xf32>
    %34 = vector.extract_strided_slice %31 {offsets = [0, 64], sizes = [8, 32], strides = [1, 1]} : vector<8x128xf32> to vector<8x32xf32>
    %35 = vector.extract_strided_slice %30 {offsets = [0, 96], sizes = [8, 32], strides = [1, 1]} : vector<8x128xf32> to vector<8x32xf32>
    %36 = arith.mulf %33, %18 : vector<8x32xf32>
    %37 = arith.mulf %32, %34 : vector<8x32xf32>
    %38 = arith.addf %36, %37 : vector<8x32xf32>
    %39 = math.tanh %38 : vector<8x32xf32>
    %40 = arith.mulf %35, %39 : vector<8x32xf32>
    %41 = arith.truncf %40 : vector<8x32xf32> to vector<8x32xbf16>
    %cst_14 = arith.constant dense<0.000000e+00> : vector<8x128xf32>
    %42 = tpu.matmul %41, %16, %cst_14 {dimension_numbers = #tpu.dot_dimension_numbers<[1], [0], [0], [1], [0, 0, 1, 1], [], []>} : vector<8x32xbf16>, vector<32x128xbf16>, vector<8x128xf32> -> vector<8x128xf32>
    %43 = arith.addf %9, %42 : vector<8x128xf32>
    %cst_15 = arith.constant 5.000000e-01 : f32
    %44 = vector.broadcast %cst_15 : f32 to vector<8x128xf32>
    %45 = arith.mulf %44, %43 : vector<8x128xf32>
    %46 = tpu.concatenate %45, %43 in 0 : vector<8x128xf32>, vector<8x128xf32> -> vector<16x128xf32>
    %47 = math.tanh %46 : vector<16x128xf32>
    %48 = vector.extract_strided_slice %47 {offsets = [0, 0], sizes = [8, 128], strides = [1, 1]} : vector<16x128xf32> to vector<8x128xf32>
    %cst_16 = arith.constant 5.000000e-01 : f32
    %49 = vector.broadcast %cst_16 : f32 to vector<8x128xf32>
    %50 = arith.mulf %49, %48 : vector<8x128xf32>
    %cst_17 = arith.constant 5.000000e-01 : f32
    %51 = vector.broadcast %cst_17 : f32 to vector<8x128xf32>
    %52 = arith.addf %51, %50 : vector<8x128xf32>
    %53 = vector.extract_strided_slice %47 {offsets = [8, 0], sizes = [8, 128], strides = [1, 1]} : vector<16x128xf32> to vector<8x128xf32>
    %54 = vector.extract_strided_slice %52 {offsets = [0, 0], sizes = [8, 32], strides = [1, 1]} : vector<8x128xf32> to vector<8x32xf32>
    %55 = vector.extract_strided_slice %52 {offsets = [0, 32], sizes = [8, 32], strides = [1, 1]} : vector<8x128xf32> to vector<8x32xf32>
    %56 = vector.extract_strided_slice %53 {offsets = [0, 64], sizes = [8, 32], strides = [1, 1]} : vector<8x128xf32> to vector<8x32xf32>
    %57 = vector.extract_strided_slice %52 {offsets = [0, 96], sizes = [8, 32], strides = [1, 1]} : vector<8x128xf32> to vector<8x32xf32>
    %58 = arith.mulf %55, %38 : vector<8x32xf32>
    %59 = arith.mulf %54, %56 : vector<8x32xf32>
    %60 = arith.addf %58, %59 : vector<8x32xf32>
    %61 = math.tanh %60 : vector<8x32xf32>
    %62 = arith.mulf %57, %61 : vector<8x32xf32>
    %63 = arith.truncf %62 : vector<8x32xf32> to vector<8x32xbf16>
    %cst_18 = arith.constant dense<0.000000e+00> : vector<8x128xf32>
    %64 = tpu.matmul %63, %16, %cst_18 {dimension_numbers = #tpu.dot_dimension_numbers<[1], [0], [0], [1], [0, 0, 1, 1], [], []>} : vector<8x32xbf16>, vector<32x128xbf16>, vector<8x128xf32> -> vector<8x128xf32>
    %65 = arith.addf %10, %64 : vector<8x128xf32>
    %cst_19 = arith.constant 5.000000e-01 : f32
    %66 = vector.broadcast %cst_19 : f32 to vector<8x128xf32>
    %67 = arith.mulf %66, %65 : vector<8x128xf32>
    %68 = tpu.concatenate %67, %65 in 0 : vector<8x128xf32>, vector<8x128xf32> -> vector<16x128xf32>
    %69 = math.tanh %68 : vector<16x128xf32>
    %70 = vector.extract_strided_slice %69 {offsets = [0, 0], sizes = [8, 128], strides = [1, 1]} : vector<16x128xf32> to vector<8x128xf32>
    %cst_20 = arith.constant 5.000000e-01 : f32
    %71 = vector.broadcast %cst_20 : f32 to vector<8x128xf32>
    %72 = arith.mulf %71, %70 : vector<8x128xf32>
    %cst_21 = arith.constant 5.000000e-01 : f32
    %73 = vector.broadcast %cst_21 : f32 to vector<8x128xf32>
    %74 = arith.addf %73, %72 : vector<8x128xf32>
    %75 = vector.extract_strided_slice %69 {offsets = [8, 0], sizes = [8, 128], strides = [1, 1]} : vector<16x128xf32> to vector<8x128xf32>
    %76 = vector.extract_strided_slice %74 {offsets = [0, 0], sizes = [8, 32], strides = [1, 1]} : vector<8x128xf32> to vector<8x32xf32>
    %77 = vector.extract_strided_slice %74 {offsets = [0, 32], sizes = [8, 32], strides = [1, 1]} : vector<8x128xf32> to vector<8x32xf32>
    %78 = vector.extract_strided_slice %75 {offsets = [0, 64], sizes = [8, 32], strides = [1, 1]} : vector<8x128xf32> to vector<8x32xf32>
    %79 = vector.extract_strided_slice %74 {offsets = [0, 96], sizes = [8, 32], strides = [1, 1]} : vector<8x128xf32> to vector<8x32xf32>
    %80 = arith.mulf %77, %60 : vector<8x32xf32>
    %81 = arith.mulf %76, %78 : vector<8x32xf32>
    %82 = arith.addf %80, %81 : vector<8x32xf32>
    %83 = math.tanh %82 : vector<8x32xf32>
    %84 = arith.mulf %79, %83 : vector<8x32xf32>
    %85 = arith.truncf %84 : vector<8x32xf32> to vector<8x32xbf16>
    %cst_22 = arith.constant dense<0.000000e+00> : vector<8x128xf32>
    %86 = tpu.matmul %85, %16, %cst_22 {dimension_numbers = #tpu.dot_dimension_numbers<[1], [0], [0], [1], [0, 0, 1, 1], [], []>} : vector<8x32xbf16>, vector<32x128xbf16>, vector<8x128xf32> -> vector<8x128xf32>
    %87 = arith.addf %11, %86 : vector<8x128xf32>
    %cst_23 = arith.constant 5.000000e-01 : f32
    %88 = vector.broadcast %cst_23 : f32 to vector<8x128xf32>
    %89 = arith.mulf %88, %87 : vector<8x128xf32>
    %90 = tpu.concatenate %89, %87 in 0 : vector<8x128xf32>, vector<8x128xf32> -> vector<16x128xf32>
    %91 = math.tanh %90 : vector<16x128xf32>
    %92 = vector.extract_strided_slice %91 {offsets = [0, 0], sizes = [8, 128], strides = [1, 1]} : vector<16x128xf32> to vector<8x128xf32>
    %cst_24 = arith.constant 5.000000e-01 : f32
    %93 = vector.broadcast %cst_24 : f32 to vector<8x128xf32>
    %94 = arith.mulf %93, %92 : vector<8x128xf32>
    %cst_25 = arith.constant 5.000000e-01 : f32
    %95 = vector.broadcast %cst_25 : f32 to vector<8x128xf32>
    %96 = arith.addf %95, %94 : vector<8x128xf32>
    %97 = vector.extract_strided_slice %91 {offsets = [8, 0], sizes = [8, 128], strides = [1, 1]} : vector<16x128xf32> to vector<8x128xf32>
    %98 = vector.extract_strided_slice %96 {offsets = [0, 0], sizes = [8, 32], strides = [1, 1]} : vector<8x128xf32> to vector<8x32xf32>
    %99 = vector.extract_strided_slice %96 {offsets = [0, 32], sizes = [8, 32], strides = [1, 1]} : vector<8x128xf32> to vector<8x32xf32>
    %100 = vector.extract_strided_slice %97 {offsets = [0, 64], sizes = [8, 32], strides = [1, 1]} : vector<8x128xf32> to vector<8x32xf32>
    %101 = vector.extract_strided_slice %96 {offsets = [0, 96], sizes = [8, 32], strides = [1, 1]} : vector<8x128xf32> to vector<8x32xf32>
    %102 = arith.mulf %99, %82 : vector<8x32xf32>
    %103 = arith.mulf %98, %100 : vector<8x32xf32>
    %104 = arith.addf %102, %103 : vector<8x32xf32>
    %105 = math.tanh %104 : vector<8x32xf32>
    %106 = arith.mulf %101, %105 : vector<8x32xf32>
    %107 = arith.truncf %106 : vector<8x32xf32> to vector<8x32xbf16>
    %cst_26 = arith.constant dense<0.000000e+00> : vector<8x128xf32>
    %108 = tpu.matmul %107, %16, %cst_26 {dimension_numbers = #tpu.dot_dimension_numbers<[1], [0], [0], [1], [0, 0, 1, 1], [], []>} : vector<8x32xbf16>, vector<32x128xbf16>, vector<8x128xf32> -> vector<8x128xf32>
    %109 = arith.addf %12, %108 : vector<8x128xf32>
    %cst_27 = arith.constant 5.000000e-01 : f32
    %110 = vector.broadcast %cst_27 : f32 to vector<8x128xf32>
    %111 = arith.mulf %110, %109 : vector<8x128xf32>
    %112 = tpu.concatenate %111, %109 in 0 : vector<8x128xf32>, vector<8x128xf32> -> vector<16x128xf32>
    %113 = math.tanh %112 : vector<16x128xf32>
    %114 = vector.extract_strided_slice %113 {offsets = [0, 0], sizes = [8, 128], strides = [1, 1]} : vector<16x128xf32> to vector<8x128xf32>
    %cst_28 = arith.constant 5.000000e-01 : f32
    %115 = vector.broadcast %cst_28 : f32 to vector<8x128xf32>
    %116 = arith.mulf %115, %114 : vector<8x128xf32>
    %cst_29 = arith.constant 5.000000e-01 : f32
    %117 = vector.broadcast %cst_29 : f32 to vector<8x128xf32>
    %118 = arith.addf %117, %116 : vector<8x128xf32>
    %119 = vector.extract_strided_slice %113 {offsets = [8, 0], sizes = [8, 128], strides = [1, 1]} : vector<16x128xf32> to vector<8x128xf32>
    %120 = vector.extract_strided_slice %118 {offsets = [0, 0], sizes = [8, 32], strides = [1, 1]} : vector<8x128xf32> to vector<8x32xf32>
    %121 = vector.extract_strided_slice %118 {offsets = [0, 32], sizes = [8, 32], strides = [1, 1]} : vector<8x128xf32> to vector<8x32xf32>
    %122 = vector.extract_strided_slice %119 {offsets = [0, 64], sizes = [8, 32], strides = [1, 1]} : vector<8x128xf32> to vector<8x32xf32>
    %123 = vector.extract_strided_slice %118 {offsets = [0, 96], sizes = [8, 32], strides = [1, 1]} : vector<8x128xf32> to vector<8x32xf32>
    %124 = arith.mulf %121, %104 : vector<8x32xf32>
    %125 = arith.mulf %120, %122 : vector<8x32xf32>
    %126 = arith.addf %124, %125 : vector<8x32xf32>
    %127 = math.tanh %126 : vector<8x32xf32>
    %128 = arith.mulf %123, %127 : vector<8x32xf32>
    %129 = arith.truncf %128 : vector<8x32xf32> to vector<8x32xbf16>
    %cst_30 = arith.constant dense<0.000000e+00> : vector<8x128xf32>
    %130 = tpu.matmul %129, %16, %cst_30 {dimension_numbers = #tpu.dot_dimension_numbers<[1], [0], [0], [1], [0, 0, 1, 1], [], []>} : vector<8x32xbf16>, vector<32x128xbf16>, vector<8x128xf32> -> vector<8x128xf32>
    %131 = arith.addf %13, %130 : vector<8x128xf32>
    %cst_31 = arith.constant 5.000000e-01 : f32
    %132 = vector.broadcast %cst_31 : f32 to vector<8x128xf32>
    %133 = arith.mulf %132, %131 : vector<8x128xf32>
    %134 = tpu.concatenate %133, %131 in 0 : vector<8x128xf32>, vector<8x128xf32> -> vector<16x128xf32>
    %135 = math.tanh %134 : vector<16x128xf32>
    %136 = vector.extract_strided_slice %135 {offsets = [0, 0], sizes = [8, 128], strides = [1, 1]} : vector<16x128xf32> to vector<8x128xf32>
    %cst_32 = arith.constant 5.000000e-01 : f32
    %137 = vector.broadcast %cst_32 : f32 to vector<8x128xf32>
    %138 = arith.mulf %137, %136 : vector<8x128xf32>
    %cst_33 = arith.constant 5.000000e-01 : f32
    %139 = vector.broadcast %cst_33 : f32 to vector<8x128xf32>
    %140 = arith.addf %139, %138 : vector<8x128xf32>
    %141 = vector.extract_strided_slice %135 {offsets = [8, 0], sizes = [8, 128], strides = [1, 1]} : vector<16x128xf32> to vector<8x128xf32>
    %142 = vector.extract_strided_slice %140 {offsets = [0, 0], sizes = [8, 32], strides = [1, 1]} : vector<8x128xf32> to vector<8x32xf32>
    %143 = vector.extract_strided_slice %140 {offsets = [0, 32], sizes = [8, 32], strides = [1, 1]} : vector<8x128xf32> to vector<8x32xf32>
    %144 = vector.extract_strided_slice %141 {offsets = [0, 64], sizes = [8, 32], strides = [1, 1]} : vector<8x128xf32> to vector<8x32xf32>
    %145 = vector.extract_strided_slice %140 {offsets = [0, 96], sizes = [8, 32], strides = [1, 1]} : vector<8x128xf32> to vector<8x32xf32>
    %146 = arith.mulf %143, %126 : vector<8x32xf32>
    %147 = arith.mulf %142, %144 : vector<8x32xf32>
    %148 = arith.addf %146, %147 : vector<8x32xf32>
    %149 = math.tanh %148 : vector<8x32xf32>
    %150 = arith.mulf %145, %149 : vector<8x32xf32>
    %151 = arith.truncf %150 : vector<8x32xf32> to vector<8x32xbf16>
    %cst_34 = arith.constant dense<0.000000e+00> : vector<8x128xf32>
    %152 = tpu.matmul %151, %16, %cst_34 {dimension_numbers = #tpu.dot_dimension_numbers<[1], [0], [0], [1], [0, 0, 1, 1], [], []>} : vector<8x32xbf16>, vector<32x128xbf16>, vector<8x128xf32> -> vector<8x128xf32>
    %153 = arith.addf %14, %152 : vector<8x128xf32>
    %cst_35 = arith.constant 5.000000e-01 : f32
    %154 = vector.broadcast %cst_35 : f32 to vector<8x128xf32>
    %155 = arith.mulf %154, %153 : vector<8x128xf32>
    %156 = tpu.concatenate %155, %153 in 0 : vector<8x128xf32>, vector<8x128xf32> -> vector<16x128xf32>
    %157 = math.tanh %156 : vector<16x128xf32>
    %158 = vector.extract_strided_slice %157 {offsets = [0, 0], sizes = [8, 128], strides = [1, 1]} : vector<16x128xf32> to vector<8x128xf32>
    %cst_36 = arith.constant 5.000000e-01 : f32
    %159 = vector.broadcast %cst_36 : f32 to vector<8x128xf32>
    %160 = arith.mulf %159, %158 : vector<8x128xf32>
    %cst_37 = arith.constant 5.000000e-01 : f32
    %161 = vector.broadcast %cst_37 : f32 to vector<8x128xf32>
    %162 = arith.addf %161, %160 : vector<8x128xf32>
    %163 = vector.extract_strided_slice %157 {offsets = [8, 0], sizes = [8, 128], strides = [1, 1]} : vector<16x128xf32> to vector<8x128xf32>
    %164 = vector.extract_strided_slice %162 {offsets = [0, 0], sizes = [8, 32], strides = [1, 1]} : vector<8x128xf32> to vector<8x32xf32>
    %165 = vector.extract_strided_slice %162 {offsets = [0, 32], sizes = [8, 32], strides = [1, 1]} : vector<8x128xf32> to vector<8x32xf32>
    %166 = vector.extract_strided_slice %163 {offsets = [0, 64], sizes = [8, 32], strides = [1, 1]} : vector<8x128xf32> to vector<8x32xf32>
    %167 = vector.extract_strided_slice %162 {offsets = [0, 96], sizes = [8, 32], strides = [1, 1]} : vector<8x128xf32> to vector<8x32xf32>
    %168 = arith.mulf %165, %148 : vector<8x32xf32>
    %169 = arith.mulf %164, %166 : vector<8x32xf32>
    %170 = arith.addf %168, %169 : vector<8x32xf32>
    %171 = math.tanh %170 : vector<8x32xf32>
    %172 = arith.mulf %167, %171 : vector<8x32xf32>
    %173 = arith.truncf %172 : vector<8x32xf32> to vector<8x32xbf16>
    %cst_38 = arith.constant dense<0.000000e+00> : vector<8x128xf32>
    %174 = tpu.matmul %173, %16, %cst_38 {dimension_numbers = #tpu.dot_dimension_numbers<[1], [0], [0], [1], [0, 0, 1, 1], [], []>} : vector<8x32xbf16>, vector<32x128xbf16>, vector<8x128xf32> -> vector<8x128xf32>
    %175 = arith.addf %15, %174 : vector<8x128xf32>
    %cst_39 = arith.constant 5.000000e-01 : f32
    %176 = vector.broadcast %cst_39 : f32 to vector<8x128xf32>
    %177 = arith.mulf %176, %175 : vector<8x128xf32>
    %178 = tpu.concatenate %177, %175 in 0 : vector<8x128xf32>, vector<8x128xf32> -> vector<16x128xf32>
    %179 = math.tanh %178 : vector<16x128xf32>
    %180 = vector.extract_strided_slice %179 {offsets = [0, 0], sizes = [8, 128], strides = [1, 1]} : vector<16x128xf32> to vector<8x128xf32>
    %cst_40 = arith.constant 5.000000e-01 : f32
    %181 = vector.broadcast %cst_40 : f32 to vector<8x128xf32>
    %182 = arith.mulf %181, %180 : vector<8x128xf32>
    %cst_41 = arith.constant 5.000000e-01 : f32
    %183 = vector.broadcast %cst_41 : f32 to vector<8x128xf32>
    %184 = arith.addf %183, %182 : vector<8x128xf32>
    %185 = vector.extract_strided_slice %179 {offsets = [8, 0], sizes = [8, 128], strides = [1, 1]} : vector<16x128xf32> to vector<8x128xf32>
    %186 = vector.extract_strided_slice %184 {offsets = [0, 0], sizes = [8, 32], strides = [1, 1]} : vector<8x128xf32> to vector<8x32xf32>
    %187 = vector.extract_strided_slice %184 {offsets = [0, 32], sizes = [8, 32], strides = [1, 1]} : vector<8x128xf32> to vector<8x32xf32>
    %188 = vector.extract_strided_slice %185 {offsets = [0, 64], sizes = [8, 32], strides = [1, 1]} : vector<8x128xf32> to vector<8x32xf32>
    %189 = vector.extract_strided_slice %184 {offsets = [0, 96], sizes = [8, 32], strides = [1, 1]} : vector<8x128xf32> to vector<8x32xf32>
    %190 = arith.mulf %187, %170 : vector<8x32xf32>
    %191 = arith.mulf %186, %188 : vector<8x32xf32>
    %192 = arith.addf %190, %191 : vector<8x32xf32>
    %193 = math.tanh %192 : vector<8x32xf32>
    %194 = arith.mulf %189, %193 : vector<8x32xf32>
    %195 = arith.truncf %194 : vector<8x32xf32> to vector<8x32xbf16>
    %c0_42 = arith.constant 0 : index
    %c0_43 = arith.constant 0 : index
    %196 = vector.load %arg5[%c0_42, %c0_43] : memref<32x8xbf16, #tpu.memory_space<vmem>>, vector<32x8xbf16>
    %cst_44 = arith.constant dense<0.000000e+00> : vector<8x8xf32>
    %197 = tpu.matmul %195, %196, %cst_44 {dimension_numbers = #tpu.dot_dimension_numbers<[1], [0], [0], [1], [0, 0, 1, 1], [], []>} : vector<8x32xbf16>, vector<32x8xbf16>, vector<8x8xf32> -> vector<8x8xf32>
    %c0_45 = arith.constant 0 : index
    %c0_46 = arith.constant 0 : index
    %198 = vector.load %arg6[%c0_45, %c0_46] : memref<1x8xf32, #tpu.memory_space<vmem>>, vector<1x8xf32>
    %199 = vector.broadcast %198 : vector<1x8xf32> to vector<8x8xf32>
    %200 = arith.addf %197, %199 : vector<8x8xf32>
    %201 = arith.negf %200 : vector<8x8xf32>
    %202 = math.exp %201 : vector<8x8xf32>
    %cst_47 = arith.constant 1.000000e+00 : f32
    %203 = vector.broadcast %cst_47 : f32 to vector<8x8xf32>
    %204 = arith.addf %203, %202 : vector<8x8xf32>
    %205 = arith.divf %203, %204 : vector<8x8xf32>
    %c0_48 = arith.constant 0 : index
    %c0_49 = arith.constant 0 : index
    %206 = vector.load %arg7[%c0_48, %c0_49] : memref<8x8xf32, #tpu.memory_space<vmem>>, vector<8x8xf32>
    tpu.vector_store %arg7[%c0_48, %c0_49], %205 {strides = array<i32>} : memref<8x8xf32, #tpu.memory_space<vmem>>, vector<8x8xf32>,
    return
  }
  func.func @transform_0(%arg0: i32) -> (i32, i32, i32) {
    %c0_i32 = arith.constant 0 : i32
    %c0_i32_0 = arith.constant 0 : i32
    %c0_i32_1 = arith.constant 0 : i32
    return %arg0, %c0_i32, %c0_i32_0 : i32, i32, i32
  }
  func.func @transform_1(%arg0: i32) -> (i32, i32) {
    %c0_i32 = arith.constant 0 : i32
    %c0_i32_0 = arith.constant 0 : i32
    %c0_i32_1 = arith.constant 0 : i32
    return %c0_i32, %c0_i32_0 : i32, i32
  }
  func.func @transform_2(%arg0: i32) -> (i32, i32) {
    %c0_i32 = arith.constant 0 : i32
    %c0_i32_0 = arith.constant 0 : i32
    %c0_i32_1 = arith.constant 0 : i32
    return %c0_i32, %c0_i32_0 : i32, i32
  }
  func.func @transform_3(%arg0: i32) -> (i32, i32) {
    %c0_i32 = arith.constant 0 : i32
    %c0_i32_0 = arith.constant 0 : i32
    %c0_i32_1 = arith.constant 0 : i32
    return %c0_i32, %c0_i32_0 : i32, i32
  }
  func.func @transform_4(%arg0: i32) -> (i32, i32) {
    %c0_i32 = arith.constant 0 : i32
    %c0_i32_0 = arith.constant 0 : i32
    %c0_i32_1 = arith.constant 0 : i32
    return %c0_i32, %c0_i32_0 : i32, i32
  }
  func.func @transform_5(%arg0: i32) -> (i32, i32) {
    %c0_i32 = arith.constant 0 : i32
    %c0_i32_0 = arith.constant 0 : i32
    %c0_i32_1 = arith.constant 0 : i32
    return %c0_i32, %c0_i32_0 : i32, i32
  }
  func.func @transform_6(%arg0: i32) -> (i32, i32) {
    %c0_i32 = arith.constant 0 : i32
    %c0_i32_0 = arith.constant 0 : i32
    return %arg0, %c0_i32 : i32, i32
  }
}

</mosaic_0001>

<llo_original>
// kernel: _lambda_.1
$region0: #{_lambda_.1}
  #allocation0 [shape = 'u32[]', space=smem, size = 0x4, offset = 0x4, fixed_abs, tag = 'smem constant byte address 0x4 - core index']
  #allocation1 [shape = 'u32[72,128]{1,0:T(1,128)}', space=vmem, size = 0x9000, scoped, tag = 'internal scratch']
  %s0 = inlined_call_operand.vmem [shape: f32[2,64,16], index: 0, kind: input, shape index: {}]
  %s1 = inlined_call_operand.vmem [shape: bf16[16,128], index: 1, kind: input, shape index: {}]
  %s2 = inlined_call_operand.vmem [shape: bf16[32,128], index: 2, kind: input, shape index: {}]
  %s3 = inlined_call_operand.vmem [shape: f32[1,128], index: 3, kind: input, shape index: {}]
  %s4 = inlined_call_operand.vmem [shape: bf16[32,8], index: 4, kind: input, shape index: {}]
  %s5 = inlined_call_operand.vmem [shape: f32[1,8], index: 5, kind: input, shape index: {}]
  %s6 = inlined_call_operand.vmem [shape: f32[16,8], index: 6, kind: output, shape index: {}]
  %s7 = sld [smem:[#allocation0]]
  $region57: #{_lambda_.1} parent=0
    _
  %s9 = ssub.s32 1, %s7
  %s10 = scalar_select 0, %s9, %s7
  loop: start=0, step=1, limit=4
  $region2: #{_lambda_.1} parent=0 // loop_pre_header
    _
  $region3: #{_lambda_.1} parent=0 // loop_header
    %s12 = sphi 0, %s16
    %p13 = scmp.ge.s32.totalorder %s12, 4
    %s22 = sphi 0, %s24
    %s25 = sphi 0, %s22
    %s26 = sphi 0, %s25
    %s42 = sphi 0, %s26
    %s46 = sphi 0, %s46
    %s48 = sphi 0, %s46
    %s49 = sphi 0, %s48
    %s63 = sphi 0, %s49
    %s67 = sphi 0, %s67
    %s69 = sphi 0, %s67
    %s70 = sphi 0, %s69
    %s84 = sphi 0, %s70
    %s88 = sphi 0, %s88
    %s90 = sphi 0, %s88
    %s91 = sphi 0, %s90
    %s105 = sphi 0, %s91
    %s109 = sphi 0, %s109
    %s111 = sphi 0, %s109
    %s112 = sphi 0, %s111
    %s126 = sphi 0, %s112
    %s130 = sphi 0, %s130
    %s132 = sphi 0, %s130
    %s133 = sphi 0, %s132
    %s147 = sphi 0, %s133
    %s153 = sphi 0, %s155
    %s156 = sphi 0, %s153
    %s157 = sphi 0, %s156
    %s173 = sphi 0, %s157
  $region4: #{_lambda_.1} parent=0 // loop_header_branch
    %15 = sbr.rel (%p13) target = $region8
  $region5: #{_lambda_.1} parent=0 // loop_body
    %s17 = ssub.s32 %s12, 1
    %s18 = ssub.s32 %s12, 2
    %s19 = sadd.s32 %s12, 1
    %s20 = ssub.s32 %s12, %s19
    %p21 = scmp.eq.s32.totalorder %s20, 0
    %s23 = sadd.s32 %s22, 1
    %s24 = scalar_select %p21, %s22, %s23
    %p27 = pneg %p21
    %p28 = scmp.eq.s32.totalorder %s12, 1
    %p29 = por %p27, %p28
    %p30 = scmp.ne.s32.totalorder %s22, %s25
    %p31 = scmp.eq.s32.totalorder %s12, 0
    %p32 = por %p30, %p31
    %p33 = scmp.ne.s32.totalorder %s22, %s25
    %p34 = scmp.eq.s32.totalorder %s17, 1
    %p35 = por %p33, %p34
    %p36 = scmp.ne.s32.totalorder %s25, %s26
    %p37 = scmp.eq.s32.totalorder %s17, 0
    %p38 = por %p36, %p37
    %p39 = scmp.ne.s32.totalorder %s25, %s26
    %p40 = scmp.eq.s32.totalorder %s18, 1
    %p41 = por %p39, %p40
    %p43 = scmp.ne.s32.totalorder %s26, %s42
    %p44 = scmp.eq.s32.totalorder %s18, 0
    %p45 = por %p43, %p44
    %s47 = sadd.s32 %s46, 1
    %p50 = scmp.eq.s32.totalorder %s12, 1
    %p51 = scmp.ne.s32.totalorder %s46, %s48
    %p52 = scmp.eq.s32.totalorder %s12, 0
    %p53 = por %p51, %p52
    %p54 = scmp.ne.s32.totalorder %s46, %s48
    %p55 = scmp.eq.s32.totalorder %s17, 1
    %p56 = por %p54, %p55
    %p57 = scmp.ne.s32.totalorder %s48, %s49
    %p58 = scmp.eq.s32.totalorder %s17, 0
    %p59 = por %p57, %p58
    %p60 = scmp.ne.s32.totalorder %s48, %s49
    %p61 = scmp.eq.s32.totalorder %s18, 1
    %p62 = por %p60, %p61
    %p64 = scmp.ne.s32.totalorder %s49, %s63
    %p65 = scmp.eq.s32.totalorder %s18, 0
    %p66 = por %p64, %p65
    %s68 = sadd.s32 %s67, 1
    %p71 = scmp.eq.s32.totalorder %s12, 1
    %p72 = scmp.ne.s32.totalorder %s67, %s69
    %p73 = scmp.eq.s32.totalorder %s12, 0
    %p74 = por %p72, %p73
    %p75 = scmp.ne.s32.totalorder %s67, %s69
    %p76 = scmp.eq.s32.totalorder %s17, 1
    %p77 = por %p75, %p76
    %p78 = scmp.ne.s32.totalorder %s69, %s70
    %p79 = scmp.eq.s32.totalorder %s17, 0
    %p80 = por %p78, %p79
    %p81 = scmp.ne.s32.totalorder %s69, %s70
    %p82 = scmp.eq.s32.totalorder %s18, 1
    %p83 = por %p81, %p82
    %p85 = scmp.ne.s32.totalorder %s70, %s84
    %p86 = scmp.eq.s32.totalorder %s18, 0
    %p87 = por %p85, %p86
    %s89 = sadd.s32 %s88, 1
    %p92 = scmp.eq.s32.totalorder %s12, 1
    %p93 = scmp.ne.s32.totalorder %s88, %s90
    %p94 = scmp.eq.s32.totalorder %s12, 0
    %p95 = por %p93, %p94
    %p96 = scmp.ne.s32.totalorder %s88, %s90
    %p97 = scmp.eq.s32.totalorder %s17, 1
    %p98 = por %p96, %p97
    %p99 = scmp.ne.s32.totalorder %s90, %s91
    %p100 = scmp.eq.s32.totalorder %s17, 0
    %p101 = por %p99, %p100
    %p102 = scmp.ne.s32.totalorder %s90, %s91
    %p103 = scmp.eq.s32.totalorder %s18, 1
    %p104 = por %p102, %p103
    %p106 = scmp.ne.s32.totalorder %s91, %s105
    %p107 = scmp.eq.s32.totalorder %s18, 0
    %p108 = por %p106, %p107
    %s110 = sadd.s32 %s109, 1
    %p113 = scmp.eq.s32.totalorder %s12, 1
    %p114 = scmp.ne.s32.totalorder %s109, %s111
    %p115 = scmp.eq.s32.totalorder %s12, 0
    %p116 = por %p114, %p115
    %p117 = scmp.ne.s32.totalorder %s109, %s111
    %p118 = scmp.eq.s32.totalorder %s17, 1
    %p119 = por %p117, %p118
    %p120 = scmp.ne.s32.totalorder %s111, %s112
    %p121 = scmp.eq.s32.totalorder %s17, 0
    %p122 = por %p120, %p121
    %p123 = scmp.ne.s32.totalorder %s111, %s112
    %p124 = scmp.eq.s32.totalorder %s18, 1
    %p125 = por %p123, %p124
    %p127 = scmp.ne.s32.totalorder %s112, %s126
    %p128 = scmp.eq.s32.totalorder %s18, 0
    %p129 = por %p127, %p128
    %s131 = sadd.s32 %s130, 1
    %p134 = scmp.eq.s32.totalorder %s12, 1
    %p135 = scmp.ne.s32.totalorder %s130, %s132
    %p136 = scmp.eq.s32.totalorder %s12, 0
    %p137 = por %p135, %p136
    %p138 = scmp.ne.s32.totalorder %s130, %s132
    %p139 = scmp.eq.s32.totalorder %s17, 1
    %p140 = por %p138, %p139
    %p141 = scmp.ne.s32.totalorder %s132, %s133
    %p142 = scmp.eq.s32.totalorder %s17, 0
    %p143 = por %p141, %p142
    %p144 = scmp.ne.s32.totalorder %s132, %s133
    %p145 = scmp.eq.s32.totalorder %s18, 1
    %p146 = por %p144, %p145
    %p148 = scmp.ne.s32.totalorder %s133, %s147
    %p149 = scmp.eq.s32.totalorder %s18, 0
    %p150 = por %p148, %p149
    %s151 = ssub.s32 %s12, %s19
    %p152 = scmp.eq.s32.totalorder %s151, 0
    %s154 = sadd.s32 %s153, 1
    %s155 = scalar_select %p152, %s153, %s154
    %p158 = pneg %p152
    %p159 = scmp.eq.s32.totalorder %s12, 1
    %p160 = por %p158, %p159
    %p161 = scmp.ne.s32.totalorder %s153, %s156
    %p162 = scmp.eq.s32.totalorder %s12, 0
    %p163 = por %p161, %p162
    %p164 = scmp.ne.s32.totalorder %s153, %s156
    %p165 = scmp.eq.s32.totalorder %s17, 1
    %p166 = por %p164, %p165
    %p167 = scmp.ne.s32.totalorder %s156, %s157
    %p168 = scmp.eq.s32.totalorder %s17, 0
    %p169 = por %p167, %p168
    %p170 = scmp.ne.s32.totalorder %s156, %s157
    %p171 = scmp.eq.s32.totalorder %s18, 1
    %p172 = por %p170, %p171
    %p174 = scmp.ne.s32.totalorder %s157, %s173
    %p175 = scmp.eq.s32.totalorder %s18, 0
    %p176 = por %p174, %p175
    %p177 = scmp.le.s32.totalorder 1, %s12
    %p178 = scmp.lt.s32.totalorder %s12, 3
    %p179 = pnand %p177, %p178
    %p180 = pneg %p179
    // Predicated region
    $region9: #{_lambda_.1} parent=5 // pred_check
      _
    $region10: #{_lambda_.1} parent=5 // pred_check_branch
      %182 = sbr.rel (%p179) target = $region12
    $region11: #{_lambda_.1} parent=5 // pred_region
      %s183 = ssub.s32 %s12, 1
      // Predicated region
      $region13: #{_lambda_.1} parent=11 // pred_check
        %p184 = pneg %p59
      $region14: #{_lambda_.1} parent=11 // pred_check_branch
        %186 = sbr.rel (%p184) target = $region16
      $region15: #{_lambda_.1} parent=11 // pred_region
        _
      $region16: #{_lambda_.1} parent=11 // pred_fallthru
        _
      // Predicated region
      $region17: #{_lambda_.1} parent=11 // pred_check
        %p187 = pneg %p80
      $region18: #{_lambda_.1} parent=11 // pred_check_branch
        %189 = sbr.rel (%p187) target = $region20
      $region19: #{_lambda_.1} parent=11 // pred_region
        _
      $region20: #{_lambda_.1} parent=11 // pred_fallthru
        _
      // Predicated region
      $region21: #{_lambda_.1} parent=11 // pred_check
        %p190 = pneg %p101
      $region22: #{_lambda_.1} parent=11 // pred_check_branch
        %192 = sbr.rel (%p190) target = $region24
      $region23: #{_lambda_.1} parent=11 // pred_region
        _
      $region24: #{_lambda_.1} parent=11 // pred_fallthru
        _
      // Predicated region
      $region25: #{_lambda_.1} parent=11 // pred_check
        %p193 = pneg %p122
      $region26: #{_lambda_.1} parent=11 // pred_check_branch
        %195 = sbr.rel (%p193) target = $region28
      $region27: #{_lambda_.1} parent=11 // pred_region
        _
      $region28: #{_lambda_.1} parent=11 // pred_fallthru
        _
      // Predicated region
      $region29: #{_lambda_.1} parent=11 // pred_check
        %p196 = pneg %p143
      $region30: #{_lambda_.1} parent=11 // pred_check_branch
        %198 = sbr.rel (%p196) target = $region32
      $region31: #{_lambda_.1} parent=11 // pred_region
        _
      $region32: #{_lambda_.1} parent=11 // pred_fallthru
        _
    $region12: #{_lambda_.1} parent=5 // pred_fallthru
      _
    %p199 = scmp.lt.s32.totalorder %s12, 2
    // Predicated region
    $region33: #{_lambda_.1} parent=5 // pred_check
      %p200 = pneg %p199
    $region34: #{_lambda_.1} parent=5 // pred_check_branch
      %202 = sbr.rel (%p200) target = $region36
    $region35: #{_lambda_.1} parent=5 // pred_region
      // Predicated region
      $region37: #{_lambda_.1} parent=35 // pred_check
        %p203 = pneg %p32
      $region38: #{_lambda_.1} parent=35 // pred_check_branch
        %205 = sbr.rel (%p203) target = $region40
      $region39: #{_lambda_.1} parent=35 // pred_region
        %p206 = scmp.lt.s32.totalorder %s12, 1
        %s207 = scalar_select %p206, %s12, 1
        %s208 = smul.addr %s207, 8
        %s209 = smul.addr %s208, 8
        %s210 = scalar_lea.vmem %s0, %s209
      $region40: #{_lambda_.1} parent=35 // pred_fallthru
        _
    $region36: #{_lambda_.1} parent=5 // pred_fallthru
      _
    %p211 = scmp.le.s32.totalorder 1, %s12
    %p212 = scmp.lt.s32.totalorder %s12, 3
    %p213 = pnand %p211, %p212
    %p214 = pneg %p213
    // Predicated region
    $region41: #{_lambda_.1} parent=5 // pred_check
      _
    $region42: #{_lambda_.1} parent=5 // pred_check_branch
      %216 = sbr.rel (%p213) target = $region44
    $region43: #{_lambda_.1} parent=5 // pred_region
      %s217 = ssub.s32 %s12, 1
      %p218 = scmp.lt.s32.totalorder %s17, 1
      %s219 = scalar_select %p218, %s17, 1
      %s220 = smul.addr %s219, 8
      %s221 = smul.addr %s220, 8
      %s222 = scalar_lea.vmem %s0, %s221
      %p223 = pneg %p38
      %p224 = pneg %p35
      %p225 = pneg %p59
      %p226 = pneg %p56
      %p227 = pneg %p80
      %p228 = pneg %p77
      %p229 = pneg %p101
      %p230 = pneg %p98
      %p231 = pneg %p122
      %p232 = pneg %p119
      %p233 = pneg %p143
      %p234 = pneg %p140
      %p235 = pneg %p169
      %p236 = pneg %p166
      %p237 = scmp.lt.s32.totalorder %s17, 1
      %s238 = scalar_select %p237, %s17, 1
      %s239 = smul.addr %s238, 8
      %s240 = scalar_lea.vmem %s6, %s239
      %p241 = scmp.lt.s32.totalorder %s17, 1
      %s242 = scalar_select %p241, %s17, 1
      %s243 = smul.addr %s242, 8
      %s244 = smul.addr %s243, 8
      %s245 = scalar_lea.vmem %s0, %s244
      %p246 = scmp.lt.s32.totalorder %s17, 1
      %s247 = scalar_select %p246, %s17, 1
      %s248 = smul.addr %s247, 8
      %s249 = scalar_lea.vmem %s6, %s248
      %v251 = vld [vmem:[%s245] sm:$0xff]
      %v252 = vld [vmem:[%s245 + $0x8] sm:$0xff]
      %v253 = vld [vmem:[%s245 + $0x10] sm:$0xff]
      %v254 = vld [vmem:[%s245 + $0x18] sm:$0xff]
      %v255 = vld [vmem:[%s245 + $0x20] sm:$0xff]
      %v256 = vld [vmem:[%s245 + $0x28] sm:$0xff]
      %v257 = vld [vmem:[%s245 + $0x30] sm:$0xff]
      %v258 = vld [vmem:[%s245 + $0x38] sm:$0xff]
      %v259 = vpack.c.bf16 %v252, %v251
      %v260 = vpack.c.bf16 %v254, %v253
      %v261 = vpack.c.bf16 %v256, %v255
      %v262 = vpack.c.bf16 %v258, %v257
      %v263 = vld [vmem:[%s1] sm:$0xf]
      %v264 = vld [vmem:[%s1 + $0x4] sm:$0xf]
      %v265 = vld [vmem:[%s3] sm:$0x1]
      %v267 = vperm.slane %v265, 0
      %v271 = vunpack.c.l.b16 %v263
      %v272 = vunpack.c.l.b16 %v264
      %v273 = vpack.c.b16 %v272, %v271
      %vm275 = vcmask 130048
      %v277 = vsel %vm275, %v259, 0
      %v280 = vsel %vm275, %v260, 0
      %v283 = vsel %vm275, %v261, 0
      %v286 = vsel %vm275, %v262, 0
      %288 = vmatpush.bf16.msra.mxu0 0
      %289 = vmatpush.bf16.msra.mxu0 0
      %290 = vmatpush.bf16.msra.mxu0 0
      %291 = vmatpush.bf16.msra.mxu0 0
      %292 = vmatpush.bf16.msra.mxu0 0
      %293 = vmatpush.bf16.msra.mxu0 0
      %294 = vmatpush.bf16.msra.mxu0 0
      %295 = vmatpush.bf16.msra.mxu0 %v273
      %296 = vmatmul.bf16.gmra.mxu0 %v277
      %v297 = vpop.f32.mrf.mxu0
      %v298 = vadd.f32 %v267, %v297
      %v299 = vpop.f32.mrf.mxu0
      %v300 = vadd.f32 %v267, %v299
      %301 = vmatmul.bf16.gmra.mxu0 %v280
      %v302 = vpop.f32.mrf.mxu0
      %v303 = vadd.f32 %v267, %v302
      %v304 = vpop.f32.mrf.mxu0
      %v305 = vadd.f32 %v267, %v304
      %306 = vmatmul.bf16.gmra.mxu0 %v283
      %v307 = vpop.f32.mrf.mxu0
      %v308 = vadd.f32 %v267, %v307
      %v309 = vpop.f32.mrf.mxu0
      %v310 = vadd.f32 %v267, %v309
      %311 = vmatmul.bf16.gmra.mxu0 %v286
      %v312 = vpop.f32.mrf.mxu0
      %v313 = vadd.f32 %v267, %v312
      %v314 = vpop.f32.mrf.mxu0
      %v315 = vadd.f32 %v267, %v314
      %316 = vdwg.mxu0
      %v317 = vld [vmem:[%s2] sm:$0xf]
      %v318 = vld [vmem:[%s2 + $0x4] sm:$0xf]
      %v319 = vld [vmem:[%s2 + $0x8] sm:$0xf]
      %v320 = vld [vmem:[%s2 + $0xc] sm:$0xf]
      %v325 = vunpack.c.l.b16 %v317
      %v326 = vunpack.c.l.b16 %v318
      %v327 = vunpack.c.l.b16 %v319
      %v328 = vunpack.c.l.b16 %v320
      %v329 = vpack.c.b16 %v326, %v325
      %v330 = vpack.c.b16 %v328, %v327
      %vm333 = vcmask 261120
      %v335 = vsel %vm333, 0, 0
      %337 = vmatpush.bf16.msra.mxu0 0
      %338 = vmatpush.bf16.msra.mxu0 0
      %339 = vmatpush.bf16.msra.mxu0 0
      %340 = vmatpush.bf16.msra.mxu0 0
      %341 = vmatpush.bf16.msra.mxu0 0
      %342 = vmatpush.bf16.msra.mxu0 0
      %343 = vmatpush.bf16.msra.mxu0 %v330
      %344 = vmatpush.bf16.msra.mxu0 %v329
      %345 = vmatmul.bf16.gmra.mxu0 %v335
      %v346 = vpop.f32.mrf.mxu0
      %v347 = vadd.f32 0.0, %v346
      %v348 = vpop.f32.mrf.mxu0
      %349 = vdwg.mxu0
      %v350 = vadd.f32 %v298, %v347
      %v351 = vmul.f32 %v350, 0.5
      %v352 = vtanh.pop %v351
      %v353 = vtanh.pop %v350
      %v354 = vmul.f32 %v352, 0.5
      %v355 = vadd.f32 %v354, 0.5
      %v356 = vmul.f32 %v355, 0.0
      %358 = vrot.lane.b32.xlu0 %v353, 64
      %v359 = vpop.permute.xlu0 %358
      %v361 = vmul.f32 %v355, %v359
      %363 = vrot.lane.b32.xlu0 %v361, 32
      %v364 = vpop.permute.xlu0 %363
      %v366 = vadd.f32 %v356, %v364
      %v367 = vtanh.pop %v366
      %369 = vrot.lane.b32.xlu0 %v367, 64
      %v370 = vpop.permute.xlu0 %369
      %v372 = vmul.f32 %v355, %v370
      %v373 = vpack.c.bf16 %v372, %v372
      %375 = vrot.lane.b32.xlu0 %v373, 32
      %v376 = vpop.permute.xlu0 %375
      %v378 = vsel %vm333, %v376, 0
      %380 = vmatpush.bf16.msra.mxu0 0
      %381 = vmatpush.bf16.msra.mxu0 0
      %382 = vmatpush.bf16.msra.mxu0 0
      %383 = vmatpush.bf16.msra.mxu0 0
      %384 = vmatpush.bf16.msra.mxu0 0
      %385 = vmatpush.bf16.msra.mxu0 0
      %386 = vmatpush.bf16.msra.mxu0 %v330
      %387 = vmatpush.bf16.msra.mxu0 %v329
      %388 = vmatmul.bf16.gmra.mxu0 %v378
      %v389 = vpop.f32.mrf.mxu0
      %v390 = vadd.f32 0.0, %v389
      %v391 = vpop.f32.mrf.mxu0
      %392 = vdwg.mxu0
      %v393 = vadd.f32 %v300, %v390
      %v394 = vmul.f32 %v393, 0.5
      %v395 = vtanh.pop %v394
      %v396 = vtanh.pop %v393
      %v397 = vmul.f32 %v395, 0.5
      %v398 = vadd.f32 %v397, 0.5
      %v399 = vmul.f32 %v398, %v366
      %401 = vrot.lane.b32.xlu0 %v396, 64
      %v402 = vpop.permute.xlu0 %401
      %v404 = vmul.f32 %v398, %v402
      %406 = vrot.lane.b32.xlu0 %v404, 32
      %v407 = vpop.permute.xlu0 %406
      %v409 = vadd.f32 %v399, %v407
      %v410 = vtanh.pop %v409
      %412 = vrot.lane.b32.xlu0 %v410, 64
      %v413 = vpop.permute.xlu0 %412
      %v415 = vmul.f32 %v398, %v413
      %v416 = vpack.c.bf16 %v415, %v415
      %418 = vrot.lane.b32.xlu0 %v416, 32
      %v419 = vpop.permute.xlu0 %418
      %v421 = vsel %vm333, %v419, 0
      %423 = vmatpush.bf16.msra.mxu0 0
      %424 = vmatpush.bf16.msra.mxu0 0
      %425 = vmatpush.bf16.msra.mxu0 0
      %426 = vmatpush.bf16.msra.mxu0 0
      %427 = vmatpush.bf16.msra.mxu0 0
      %428 = vmatpush.bf16.msra.mxu0 0
      %429 = vmatpush.bf16.msra.mxu0 %v330
      %430 = vmatpush.bf16.msra.mxu0 %v329
      %431 = vmatmul.bf16.gmra.mxu0 %v421
      %v432 = vpop.f32.mrf.mxu0
      %v433 = vadd.f32 0.0, %v432
      %v434 = vpop.f32.mrf.mxu0
      %435 = vdwg.mxu0
      %v436 = vadd.f32 %v303, %v433
      %v437 = vmul.f32 %v436, 0.5
      %v438 = vtanh.pop %v437
      %v439 = vtanh.pop %v436
      %v440 = vmul.f32 %v438, 0.5
      %v441 = vadd.f32 %v440, 0.5
      %v442 = vmul.f32 %v441, %v409
      %444 = vrot.lane.b32.xlu0 %v439, 64
      %v445 = vpop.permute.xlu0 %444
      %v447 = vmul.f32 %v441, %v445
      %449 = vrot.lane.b32.xlu0 %v447, 32
      %v450 = vpop.permute.xlu0 %449
      %v452 = vadd.f32 %v442, %v450
      %v453 = vtanh.pop %v452
      %455 = vrot.lane.b32.xlu0 %v453, 64
      %v456 = vpop.permute.xlu0 %455
      %v458 = vmul.f32 %v441, %v456
      %v459 = vpack.c.bf16 %v458, %v458
      %461 = vrot.lane.b32.xlu0 %v459, 32
      %v462 = vpop.permute.xlu0 %461
      %v464 = vsel %vm333, %v462, 0
      %466 = vmatpush.bf16.msra.mxu0 0
      %467 = vmatpush.bf16.msra.mxu0 0
      %468 = vmatpush.bf16.msra.mxu0 0
      %469 = vmatpush.bf16.msra.mxu0 0
      %470 = vmatpush.bf16.msra.mxu0 0
      %471 = vmatpush.bf16.msra.mxu0 0
      %472 = vmatpush.bf16.msra.mxu0 %v330
      %473 = vmatpush.bf16.msra.mxu0 %v329
      %474 = vmatmul.bf16.gmra.mxu0 %v464
      %v475 = vpop.f32.mrf.mxu0
      %v476 = vadd.f32 0.0, %v475
      %v477 = vpop.f32.mrf.mxu0
      %478 = vdwg.mxu0
      %v479 = vadd.f32 %v305, %v476
      %v480 = vmul.f32 %v479, 0.5
      %v481 = vtanh.pop %v480
      %v482 = vtanh.pop %v479
      %v483 = vmul.f32 %v481, 0.5
      %v484 = vadd.f32 %v483, 0.5
      %v485 = vmul.f32 %v484, %v452
      %487 = vrot.lane.b32.xlu0 %v482, 64
      %v488 = vpop.permute.xlu0 %487
      %v490 = vmul.f32 %v484, %v488
      %492 = vrot.lane.b32.xlu0 %v490, 32
      %v493 = vpop.permute.xlu0 %492
      %v495 = vadd.f32 %v485, %v493
      %v496 = vtanh.pop %v495
      %498 = vrot.lane.b32.xlu0 %v496, 64
      %v499 = vpop.permute.xlu0 %498
      %v501 = vmul.f32 %v484, %v499
      %v502 = vpack.c.bf16 %v501, %v501
      %504 = vrot.lane.b32.xlu0 %v502, 32
      %v505 = vpop.permute.xlu0 %504
      %v507 = vsel %vm333, %v505, 0
      %509 = vmatpush.bf16.msra.mxu0 0
      %510 = vmatpush.bf16.msra.mxu0 0
      %511 = vmatpush.bf16.msra.mxu0 0
      %512 = vmatpush.bf16.msra.mxu0 0
      %513 = vmatpush.bf16.msra.mxu0 0
      %514 = vmatpush.bf16.msra.mxu0 0
      %515 = vmatpush.bf16.msra.mxu0 %v330
      %516 = vmatpush.bf16.msra.mxu0 %v329
      %517 = vmatmul.bf16.gmra.mxu0 %v507
      %v518 = vpop.f32.mrf.mxu0
      %v519 = vadd.f32 0.0, %v518
      %v520 = vpop.f32.mrf.mxu0
      %521 = vdwg.mxu0
      %v522 = vadd.f32 %v308, %v519
      %v523 = vmul.f32 %v522, 0.5
      %v524 = vtanh.pop %v523
      %v525 = vtanh.pop %v522
      %v526 = vmul.f32 %v524, 0.5
      %v527 = vadd.f32 %v526, 0.5
      %v528 = vmul.f32 %v527, %v495
      %530 = vrot.lane.b32.xlu0 %v525, 64
      %v531 = vpop.permute.xlu0 %530
      %v533 = vmul.f32 %v527, %v531
      %535 = vrot.lane.b32.xlu0 %v533, 32
      %v536 = vpop.permute.xlu0 %535
      %v538 = vadd.f32 %v528, %v536
      %v539 = vtanh.pop %v538
      %541 = vrot.lane.b32.xlu0 %v539, 64
      %v542 = vpop.permute.xlu0 %541
      %v544 = vmul.f32 %v527, %v542
      %v545 = vpack.c.bf16 %v544, %v544
      %547 = vrot.lane.b32.xlu0 %v545, 32
      %v548 = vpop.permute.xlu0 %547
      %v550 = vsel %vm333, %v548, 0
      %552 = vmatpush.bf16.msra.mxu0 0
      %553 = vmatpush.bf16.msra.mxu0 0
      %554 = vmatpush.bf16.msra.mxu0 0
      %555 = vmatpush.bf16.msra.mxu0 0
      %556 = vmatpush.bf16.msra.mxu0 0
      %557 = vmatpush.bf16.msra.mxu0 0
      %558 = vmatpush.bf16.msra.mxu0 %v330
      %559 = vmatpush.bf16.msra.mxu0 %v329
      %560 = vmatmul.bf16.gmra.mxu0 %v550
      %v561 = vpop.f32.mrf.mxu0
      %v562 = vadd.f32 0.0, %v561
      %v563 = vpop.f32.mrf.mxu0
      %564 = vdwg.mxu0
      %v565 = vadd.f32 %v310, %v562
      %v566 = vmul.f32 %v565, 0.5
      %v567 = vtanh.pop %v566
      %v568 = vtanh.pop %v565
      %v569 = vmul.f32 %v567, 0.5
      %v570 = vadd.f32 %v569, 0.5
      %v571 = vmul.f32 %v570, %v538
      %573 = vrot.lane.b32.xlu0 %v568, 64
      %v574 = vpop.permute.xlu0 %573
      %v576 = vmul.f32 %v570, %v574
      %578 = vrot.lane.b32.xlu0 %v576, 32
      %v579 = vpop.permute.xlu0 %578
      %v581 = vadd.f32 %v571, %v579
      %v582 = vtanh.pop %v581
      %584 = vrot.lane.b32.xlu0 %v582, 64
      %v585 = vpop.permute.xlu0 %584
      %v587 = vmul.f32 %v570, %v585
      %v588 = vpack.c.bf16 %v587, %v587
      %590 = vrot.lane.b32.xlu0 %v588, 32
      %v591 = vpop.permute.xlu0 %590
      %v593 = vsel %vm333, %v591, 0
      %595 = vmatpush.bf16.msra.mxu0 0
      %596 = vmatpush.bf16.msra.mxu0 0
      %597 = vmatpush.bf16.msra.mxu0 0
      %598 = vmatpush.bf16.msra.mxu0 0
      %599 = vmatpush.bf16.msra.mxu0 0
      %600 = vmatpush.bf16.msra.mxu0 0
      %601 = vmatpush.bf16.msra.mxu0 %v330
      %602 = vmatpush.bf16.msra.mxu0 %v329
      %603 = vmatmul.bf16.gmra.mxu0 %v593
      %v604 = vpop.f32.mrf.mxu0
      %v605 = vadd.f32 0.0, %v604
      %v606 = vpop.f32.mrf.mxu0
      %607 = vdwg.mxu0
      %v608 = vadd.f32 %v313, %v605
      %v609 = vmul.f32 %v608, 0.5
      %v610 = vtanh.pop %v609
      %v611 = vtanh.pop %v608
      %v612 = vmul.f32 %v610, 0.5
      %v613 = vadd.f32 %v612, 0.5
      %v614 = vmul.f32 %v613, %v581
      %616 = vrot.lane.b32.xlu0 %v611, 64
      %v617 = vpop.permute.xlu0 %616
      %v619 = vmul.f32 %v613, %v617
      %621 = vrot.lane.b32.xlu0 %v619, 32
      %v622 = vpop.permute.xlu0 %621
      %v624 = vadd.f32 %v614, %v622
      %v625 = vtanh.pop %v624
      %627 = vrot.lane.b32.xlu0 %v625, 64
      %v628 = vpop.permute.xlu0 %627
      %v630 = vmul.f32 %v613, %v628
      %v631 = vpack.c.bf16 %v630, %v630
      %633 = vrot.lane.b32.xlu0 %v631, 32
      %v634 = vpop.permute.xlu0 %633
      %v636 = vsel %vm333, %v634, 0
      %638 = vmatpush.bf16.msra.mxu0 0
      %639 = vmatpush.bf16.msra.mxu0 0
      %640 = vmatpush.bf16.msra.mxu0 0
      %641 = vmatpush.bf16.msra.mxu0 0
      %642 = vmatpush.bf16.msra.mxu0 0
      %643 = vmatpush.bf16.msra.mxu0 0
      %644 = vmatpush.bf16.msra.mxu0 %v330
      %645 = vmatpush.bf16.msra.mxu0 %v329
      %646 = vmatmul.bf16.gmra.mxu0 %v636
      %v647 = vpop.f32.mrf.mxu0
      %v648 = vadd.f32 0.0, %v647
      %v649 = vpop.f32.mrf.mxu0
      %650 = vdwg.mxu0
      %v651 = vadd.f32 %v315, %v648
      %v652 = vmul.f32 %v651, 0.5
      %v653 = vtanh.pop %v652
      %v654 = vtanh.pop %v651
      %v655 = vmul.f32 %v653, 0.5
      %v656 = vadd.f32 %v655, 0.5
      %v657 = vmul.f32 %v656, %v624
      %659 = vrot.lane.b32.xlu0 %v654, 64
      %v660 = vpop.permute.xlu0 %659
      %v662 = vmul.f32 %v656, %v660
      %664 = vrot.lane.b32.xlu0 %v662, 32
      %v665 = vpop.permute.xlu0 %664
      %v667 = vadd.f32 %v657, %v665
      %v668 = vtanh.pop %v667
      %670 = vrot.lane.b32.xlu0 %v668, 64
      %v671 = vpop.permute.xlu0 %670
      %v673 = vmul.f32 %v656, %v671
      %v674 = vpack.c.bf16 %v673, %v673
      %v675 = vld [vmem:[%s4] sm:$0xf]
      %v676 = vld [vmem:[%s4 + $0x4] sm:$0xf]
      %v677 = vld [vmem:[%s4 + $0x8] sm:$0xf]
      %v678 = vld [vmem:[%s4 + $0xc] sm:$0xf]
      %v679 = vld [vmem:[%s5] sm:$0x1]
      %v681 = vperm.slane %v679, 0
      %684 = vrot.lane.b32.xlu0 %v674, 32
      %v685 = vpop.permute.xlu0 %684
      %v690 = vunpack.c.l.b16 %v675
      %v691 = vunpack.c.l.b16 %v676
      %v692 = vunpack.c.l.b16 %v677
      %v693 = vunpack.c.l.b16 %v678
      %v694 = vpack.c.b16 %v691, %v690
      %v695 = vpack.c.b16 %v693, %v692
      %v699 = vsel %vm333, %v685, 0
      %701 = vmatpush.bf16.msra.mxu0 0
      %702 = vmatpush.bf16.msra.mxu0 0
      %703 = vmatpush.bf16.msra.mxu0 0
      %704 = vmatpush.bf16.msra.mxu0 0
      %705 = vmatpush.bf16.msra.mxu0 0
      %706 = vmatpush.bf16.msra.mxu0 0
      %707 = vmatpush.bf16.msra.mxu0 %v695
      %708 = vmatpush.bf16.msra.mxu0 %v694
      %709 = vmatmul.bf16.gmra.mxu0 %v699
      %v710 = vpop.f32.mrf.mxu0
      %v711 = vadd.f32 %v681, %v710
      %v712 = vpop.f32.mrf.mxu0
      %713 = vdwg.mxu0
      %v714 = vxor.u32 %v711, 2147483648
      %v715 = vmul.f32 %v714, 1.442695
      %v716 = vpow.pop %v715
      %v717 = vadd.f32 %v716, 1.0
      %v718 = vrcp.pop %v717
      %v719 = vmul.f32 %v717, %v718
      %v720 = vsub.f32 1.0, %v719
      %v721 = vmul.f32 %v718, %v720
      %v722 = vadd.f32 %v718, %v721
      %vm723 = vweird.f32 %v717
      %vm724 = vweird.f32 %v718
      %vm725 = vmor %vm723, %vm724
      %v726 = vsel %vm725, %v718, %v722
      %v727 = vand.u32 2147483647, %v717
      %vm728 = vcmp.eq.f32.partialorder %v727, 8.507059e+37
      %v729 = vand.u32 %v717, 2147483648
      %v730 = vor.u32 1.1754944e-38, %v729
      %v731 = vsel %vm728, %v730, %v726
      %v732 = vmul.f32 1.0, %v731
      %vm733 = vcmask 64512
      %734 = vst.msk [vmem:[%s249] sm:$0xff] %vm733, %v732
      %p735 = scmp.lt.s32.totalorder %s17, 1
      %s736 = scalar_select %p735, %s17, 1
      %s737 = smul.addr %s736, 8
      %s738 = scalar_lea.vmem %s6, %s737
      // Predicated region
      $region45: #{_lambda_.1} parent=43 // pred_check
        %p739 = pneg %p166
      $region46: #{_lambda_.1} parent=43 // pred_check_branch
        %741 = sbr.rel (%p739) target = $region48
      $region47: #{_lambda_.1} parent=43 // pred_region
        _
      $region48: #{_lambda_.1} parent=43 // pred_fallthru
        _
    $region44: #{_lambda_.1} parent=5 // pred_fallthru
      _
    %p742 = scmp.le.s32.totalorder 2, %s12
    // Predicated region
    $region49: #{_lambda_.1} parent=5 // pred_check
      %p743 = pneg %p742
    $region50: #{_lambda_.1} parent=5 // pred_check_branch
      %745 = sbr.rel (%p743) target = $region52
    $region51: #{_lambda_.1} parent=5 // pred_region
      %s746 = ssub.s32 %s12, 2
      // Predicated region
      $region53: #{_lambda_.1} parent=51 // pred_check
        %p747 = pneg %p172
      $region54: #{_lambda_.1} parent=51 // pred_check_branch
        %749 = sbr.rel (%p747) target = $region56
      $region55: #{_lambda_.1} parent=51 // pred_region
        %p750 = scmp.lt.s32.totalorder %s18, 1
        %s751 = scalar_select %p750, %s18, 1
        %s752 = smul.addr %s751, 8
        %s753 = scalar_lea.vmem %s6, %s752
      $region56: #{_lambda_.1} parent=51 // pred_fallthru
        _
    $region52: #{_lambda_.1} parent=5 // pred_fallthru
      _
  $region6: #{_lambda_.1} parent=0 // loop_footer
    %s16 = sadd.s32 1, %s12
  $region7: #{_lambda_.1} parent=0 // loop_footer_branch
    %11 = sbr.rel target = $region3
  $region8: #{_lambda_.1} parent=0 // loop_exit
    _

</llo_original>
